<compile_context>
chip_gen: v7x
topology: tpu7x:2x2x1
jax: 0.10.0
libtpu: 0.0.40
codegen_flags: <defaults>
</compile_context>

<pallas_src>
import functools

import jax
import jax.numpy as jnp
from jax.experimental import pallas as pl
from jax.experimental.pallas import tpu as pltpu

EPS = 1e-5

# Batch-row threshold above which the w5 HBM prefetch (overlapping layers 1-4)
# pays for its scratch/semaphore; below it the DMA wait would just stall an
# already latency-bound kernel.
_W5_PREFETCH_MIN_BATCH = 256


def _round_up(x, m):
    return ((x + m - 1) // m) * m


def _gen_block(x_bf16, w_bf16, g, beta):
    """Linear (bias-free) -> BatchNorm1d (training-mode batch stats) -> ReLU.

    The Linear bias is a mathematical no-op under training-mode BatchNorm (the
    mean subtraction removes it), so it is dropped.  x_bf16: (B, in) bf16,
    w_bf16: (in, out) bf16, g/beta: (1, out) f32.  Returns (B, out) bf16 so the
    inter-layer activation is half-width.
    """
    # MXU: bf16 operands, f32 accumulation.
    h = jnp.dot(x_bf16, w_bf16, preferred_element_type=jnp.float32)   # (B, out) f32
    # Batch statistics (biased variance via E[h^2] - mu^2; well conditioned now
    # that no redundant bias inflates the per-feature mean).
    # TODO(synk): for large batch, push these axis-0 sums onto the MXU with a
    # ones-row matmul and move to a batch-tiled two-pass BN (also enables a
    # 'parallel' batch grid for v7x's two TensorCores); at whole-batch-in-VMEM
    # sizes the sublane reduce is a single vreg op and this is irrelevant.
    mu = jnp.mean(h, axis=0, keepdims=True)                           # (1, out)
    ex2 = jnp.mean(h * h, axis=0, keepdims=True)
    var = jnp.maximum(ex2 - mu * mu, 0.0)
    # Fold BN affine into one scale/shift: mul + add + max per element;
    # rsqrt rides the EUP slot.
    scale = g * jax.lax.rsqrt(var + EPS)
    shift = beta - mu * scale
    return jnp.maximum(h * scale + shift, 0.0).astype(jnp.bfloat16)


def _final_layer(h_bf16, w5_bf16, b5, out_ref):
    logits = jnp.dot(h_bf16, w5_bf16, preferred_element_type=jnp.float32) + b5
    out_ref[...] = jax.nn.sigmoid(logits).astype(out_ref.dtype)


def generator_kernel_small(x_ref,
                           w1, g1, be1,
                           w2, g2, be2,
                           w3, g3, be3,
                           w4, g4, be4,
                           w5, b5,
                           out_ref):
    """Small-batch path: everything resident in VMEM, no manual DMA."""
    h = x_ref[...].astype(jnp.bfloat16)
    h = _gen_block(h, w1[...], g1[...], be1[...])
    h = _gen_block(h, w2[...], g2[...], be2[...])
    h = _gen_block(h, w3[...], g3[...], be3[...])
    h = _gen_block(h, w4[...], g4[...], be4[...])
    _final_layer(h, w5[...], b5[...], out_ref)


def generator_kernel_prefetch(x_ref,
                              w1, g1, be1,
                              w2, g2, be2,
                              w3, g3, be3,
                              w4, g4, be4,
                              w5_hbm, b5,
                              out_ref,
                              w5_buf, w5_sem):
    """Large-batch path: w5 (>50% of weight bytes, needed last) stays in HBM and
    its HBM->VMEM DMA overlaps the compute of layers 1-4."""
    w5_copy = pltpu.make_async_copy(w5_hbm, w5_buf, w5_sem)
    w5_copy.start()

    h = x_ref[...].astype(jnp.bfloat16)
    h = _gen_block(h, w1[...], g1[...], be1[...])
    h = _gen_block(h, w2[...], g2[...], be2[...])
    h = _gen_block(h, w3[...], g3[...], be3[...])
    h = _gen_block(h, w4[...], g4[...], be4[...])

    w5_copy.wait()
    _final_layer(h, w5_buf[...], b5[...], out_ref)


def init_generator_params(key, z_dim=10, im_dim=784, hidden_dim=128):
    """Deterministic PyTorch-style init (Linear: U(-1/sqrt(in), 1/sqrt(in)))."""
    dims = [z_dim, hidden_dim, hidden_dim * 2, hidden_dim * 4, hidden_dim * 8, im_dim]
    params = {}
    for i in range(5):
        fan_in, fan_out = dims[i], dims[i + 1]
        key, kw, kb = jax.random.split(key, 3)
        bound = 1.0 / (fan_in ** 0.5)
        params[f"w{i + 1}"] = jax.random.uniform(
            kw, (fan_in, fan_out), jnp.float32, -bound, bound)
        params[f"b{i + 1}"] = jax.random.uniform(
            kb, (1, fan_out), jnp.float32, -bound, bound)
        if i < 4:  # BatchNorm affine params for the 4 generator blocks
            params[f"g{i + 1}"] = jnp.ones((1, fan_out), jnp.float32)
            params[f"be{i + 1}"] = jnp.zeros((1, fan_out), jnp.float32)
    return params, dims


def prepare_generator_params(params, z_dim, im_dim):
    """One-time parameter prep for the kernel:
    - weights -> bf16 (MXU operands); BN params and b5 stay f32,
    - b1..b4 are dropped (mathematically cancelled by training-mode BN),
    - zero-pad the z_dim contraction (w1 rows) and im_dim output (w5 cols, b5)
      up to multiples of 128 for aligned matmuls and lane-dense stores.
    """
    z_pad = _round_up(z_dim, 128)
    im_pad = _round_up(im_dim, 128)
    prep = {}
    prep["w1"] = jnp.pad(params["w1"], ((0, z_pad - z_dim), (0, 0))).astype(jnp.bfloat16)
    for i in range(1, 5):
        if i > 1:
            prep[f"w{i}"] = params[f"w{i}"].astype(jnp.bfloat16)
        prep[f"g{i}"] = params[f"g{i}"]
        prep[f"be{i}"] = params[f"be{i}"]
    prep["w5"] = jnp.pad(params["w5"], ((0, 0), (0, im_pad - im_dim))).astype(jnp.bfloat16)
    prep["b5"] = jnp.pad(params["b5"], ((0, 0), (0, im_pad - im_dim)))
    return prep


def _estimate_vmem_bytes(batch, z_pad, hidden, im_pad):
    """Rough upper bound on the kernel's VMEM footprint (bytes)."""
    bf16, f32 = 2, 4
    h8 = hidden * 8
    w_bytes = (z_pad * hidden + hidden * 2 * hidden + 2 * hidden * 4 * hidden
               + 4 * hidden * h8 + h8 * im_pad) * bf16
    # Widest live activation set: f32 h + f32 h*h temp + bf16 carry + input + output.
    act_bytes = batch * (h8 * f32 * 2 + h8 * bf16 + im_pad * f32 * 2 + z_pad * f32)
    bn_bytes = (h8 * 4 + im_pad) * f32 * 6
    return w_bytes + act_bytes + bn_bytes


@functools.partial(jax.jit, static_argnames=("im_dim",))
def generator_forward(noise, prep, im_dim):
    batch, z_dim = noise.shape
    z_pad = prep["w1"].shape[0]
    hid8, im_pad = prep["w5"].shape
    hidden = hid8 // 8
    noise_p = jnp.pad(noise.astype(jnp.float32), ((0, 0), (0, z_pad - z_dim)))

    vmem = pl.BlockSpec(memory_space=pltpu.MemorySpace.VMEM)
    args = [
        noise_p,
        prep["w1"], prep["g1"], prep["be1"],
        prep["w2"], prep["g2"], prep["be2"],
        prep["w3"], prep["g3"], prep["be3"],
        prep["w4"], prep["g4"], prep["be4"],
        prep["w5"], prep["b5"],
    ]

    # Raise the scoped VMEM limit only when the footprint needs it (v5e defaults
    # to 16 MiB scoped); at the shipped small shapes the default is plenty.
    est = _estimate_vmem_bytes(batch, z_pad, hidden, im_pad)
    compiler_params = None
    if est > 12 * (1 << 20):
        # TODO(synk): for very large batch (esp. v7x: 64 MiB physical VMEM, 2 TCs)
        # restructure to a batch-tiled grid with two-pass BN + dimension_semantics
        # instead of a single whole-batch block.
        compiler_params = pltpu.CompilerParams(
            vmem_limit_bytes=min(int(est * 1.5) + (4 << 20), 100 << 20))

    if batch >= _W5_PREFETCH_MIN_BATCH:
        # Large batch: layers 1-4 run long enough to hide the ~1.75 MB w5 DMA.
        in_specs = [vmem] * 13 + [pl.BlockSpec(memory_space=pl.ANY), vmem]
        out_padded = pl.pallas_call(
            generator_kernel_prefetch,
            out_shape=jax.ShapeDtypeStruct((batch, im_pad), jnp.float32),
            in_specs=in_specs,
            out_specs=vmem,
            scratch_shapes=[
                pltpu.VMEM((hid8, im_pad), jnp.bfloat16),   # prefetched w5
                pltpu.SemaphoreType.DMA(()),
            ],
            compiler_params=compiler_params,
        )(*args)
    else:
        # Small batch: overhead/latency-bound; no manual DMA machinery.
        out_padded = pl.pallas_call(
            generator_kernel_small,
            out_shape=jax.ShapeDtypeStruct((batch, im_pad), jnp.float32),
            in_specs=[vmem] * 15,
            out_specs=vmem,
            compiler_params=compiler_params,
        )(*args)
    return out_padded[:, :im_dim]


def generator_forward_ref_f32(noise, params):
    """Pure-f32 reference with PyTorch semantics (Linear bias + training-mode BN)."""
    x = noise.astype(jnp.float32)
    for i in range(1, 5):
        h = x @ params[f"w{i}"] + params[f"b{i}"]
        mu = jnp.mean(h, axis=0, keepdims=True)
        var = jnp.mean((h - mu) ** 2, axis=0, keepdims=True)
        hn = (h - mu) / jnp.sqrt(var + EPS)
        x = jnp.maximum(params[f"g{i}"] * hn + params[f"be{i}"], 0.0)
    return jax.nn.sigmoid(x @ params["w5"] + params["b5"])


def generator_forward_ref_bf16(noise, params):
    """Reference mirroring the kernel's numerics (bf16 matmul operands and
    inter-layer activations, f32 accumulation, bias-free blocks, folded BN
    scale/shift) for a tight correctness check."""
    def mm(a_bf16, w):
        return jnp.dot(a_bf16, w.astype(jnp.bfloat16),
                       preferred_element_type=jnp.float32)
    x = noise.astype(jnp.bfloat16)
    for i in range(1, 5):
        h = mm(x, params[f"w{i}"])              # bias dropped: cancelled by BN
        mu = jnp.mean(h, axis=0, keepdims=True)
        ex2 = jnp.mean(h * h, axis=0, keepdims=True)
        var = jnp.maximum(ex2 - mu * mu, 0.0)
        scale = params[f"g{i}"] * jax.lax.rsqrt(var + EPS)
        shift = params[f"be{i}"] - mu * scale
        x = jnp.maximum(h * scale + shift, 0.0).astype(jnp.bfloat16)
    return jax.nn.sigmoid(mm(x, params["w5"]) + params["b5"])


if __name__ == "__main__":
    # Small, module-consistent shapes: noise (n_samples=8, z_dim=16),
    # hidden_dim=32 -> layers 16 -> 32 -> 64 -> 128 -> 256 -> im_dim=64.
    # (Production batch should be >=128 rows to actually feed the MXU; at
    # batch=8 the kernel is fixed-overhead bound by design.)
    Z_DIM, IM_DIM, HIDDEN = 16, 64, 32
    BATCH = 8

    key = jax.random.PRNGKey(0)
    key_noise, key_params = jax.random.split(key)
    params, _ = init_generator_params(key_params, Z_DIM, IM_DIM, HIDDEN)
    noise = jax.random.normal(key_noise, (BATCH, Z_DIM), jnp.float32)

    prep = prepare_generator_params(params, Z_DIM, IM_DIM)

    out = generator_forward(noise, prep, IM_DIM)
    out = jax.block_until_ready(out)

    assert out.shape == (BATCH, IM_DIM)
    assert bool(jnp.all(jnp.isfinite(out)))

    # Tight check against a reference that mirrors the kernel's bf16 numerics.
    ref_bf16 = generator_forward_ref_bf16(noise, params)
    assert jnp.allclose(out, ref_bf16, atol=2e-3, rtol=2e-3)

    # Looser check against the pure-f32 PyTorch-semantics reference
    # (bf16 matmul operands/activations cost a few mantissa bits; the dropped
    # layer-1..4 biases are mathematically exact under training-mode BN).
    ref_f32 = generator_forward_ref_f32(noise, params)
    assert jnp.allclose(out, ref_f32, atol=3e-2)

    print("KERNEL_OK")
</pallas_src>

<mosaic_0001>
module attributes {stable_mosaic.version = 11 : i64} {
  func.func @generator_kernel_small(%arg0: memref<8x128xf32, #tpu.memory_space<vmem>>, %arg1: memref<128x32xbf16, #tpu.memory_space<vmem>>, %arg2: memref<1x32xf32, #tpu.memory_space<vmem>>, %arg3: memref<1x32xf32, #tpu.memory_space<vmem>>, %arg4: memref<32x64xbf16, #tpu.memory_space<vmem>>, %arg5: memref<1x64xf32, #tpu.memory_space<vmem>>, %arg6: memref<1x64xf32, #tpu.memory_space<vmem>>, %arg7: memref<64x128xbf16, #tpu.memory_space<vmem>>, %arg8: memref<1x128xf32, #tpu.memory_space<vmem>>, %arg9: memref<1x128xf32, #tpu.memory_space<vmem>>, %arg10: memref<128x256xbf16, #tpu.memory_space<vmem>>, %arg11: memref<1x256xf32, #tpu.memory_space<vmem>>, %arg12: memref<1x256xf32, #tpu.memory_space<vmem>>, %arg13: memref<256x128xbf16, #tpu.memory_space<vmem>>, %arg14: memref<1x128xf32, #tpu.memory_space<vmem>>, %arg15: memref<8x128xf32, #tpu.memory_space<vmem>>) attributes {dimension_semantics = [], scalar_prefetch = 0 : i64, scratch_operands = 0 : i64, tpu.core_type = #tpu.core_type<tc>} {
    %c0 = arith.constant 0 : index
    %c0_0 = arith.constant 0 : index
    %0 = vector.load %arg0[%c0, %c0_0] : memref<8x128xf32, #tpu.memory_space<vmem>>, vector<8x128xf32>
    %1 = arith.truncf %0 : vector<8x128xf32> to vector<8x128xbf16>
    %c0_1 = arith.constant 0 : index
    %c0_2 = arith.constant 0 : index
    %2 = vector.load %arg1[%c0_1, %c0_2] : memref<128x32xbf16, #tpu.memory_space<vmem>>, vector<128x32xbf16>
    %c0_3 = arith.constant 0 : index
    %c0_4 = arith.constant 0 : index
    %3 = vector.load %arg2[%c0_3, %c0_4] : memref<1x32xf32, #tpu.memory_space<vmem>>, vector<1x32xf32>
    %c0_5 = arith.constant 0 : index
    %c0_6 = arith.constant 0 : index
    %4 = vector.load %arg3[%c0_5, %c0_6] : memref<1x32xf32, #tpu.memory_space<vmem>>, vector<1x32xf32>
    %cst = arith.constant dense<0.000000e+00> : vector<8x32xf32>
    %5 = tpu.matmul %1, %2, %cst {dimension_numbers = #tpu.dot_dimension_numbers<[1], [0], [0], [1], [0, 0, 1, 1], [], []>} : vector<8x128xbf16>, vector<128x32xbf16>, vector<8x32xf32> -> vector<8x32xf32>
    %cst_7 = arith.constant dense<0.000000e+00> : vector<32xf32>
    %6 = vector.multi_reduction <add>, %5, %cst_7 [0] : vector<8x32xf32> to vector<32xf32>
    %7 = vector.shape_cast %6 : vector<32xf32> to vector<1x32xf32>
    %cst_8 = arith.constant 8.000000e+00 : f32
    %8 = vector.broadcast %cst_8 : f32 to vector<1x32xf32>
    %9 = arith.divf %7, %8 : vector<1x32xf32>
    %10 = arith.mulf %5, %5 : vector<8x32xf32>
    %cst_9 = arith.constant dense<0.000000e+00> : vector<32xf32>
    %11 = vector.multi_reduction <add>, %10, %cst_9 [0] : vector<8x32xf32> to vector<32xf32>
    %12 = vector.shape_cast %11 : vector<32xf32> to vector<1x32xf32>
    %cst_10 = arith.constant 8.000000e+00 : f32
    %13 = vector.broadcast %cst_10 : f32 to vector<1x32xf32>
    %14 = arith.divf %12, %13 : vector<1x32xf32>
    %15 = arith.mulf %9, %9 : vector<1x32xf32>
    %16 = arith.subf %14, %15 : vector<1x32xf32>
    %cst_11 = arith.constant 0.000000e+00 : f32
    %17 = vector.broadcast %cst_11 : f32 to vector<1x32xf32>
    %18 = arith.maximumf %16, %17 : vector<1x32xf32>
    %cst_12 = arith.constant 9.99999974E-6 : f32
    %19 = vector.broadcast %cst_12 : f32 to vector<1x32xf32>
    %20 = arith.addf %18, %19 : vector<1x32xf32>
    %21 = math.rsqrt %20 : vector<1x32xf32>
    %22 = arith.mulf %3, %21 : vector<1x32xf32>
    %23 = arith.mulf %9, %22 : vector<1x32xf32>
    %24 = arith.subf %4, %23 : vector<1x32xf32>
    %25 = vector.broadcast %22 : vector<1x32xf32> to vector<8x32xf32>
    %26 = arith.mulf %5, %25 : vector<8x32xf32>
    %27 = vector.broadcast %24 : vector<1x32xf32> to vector<8x32xf32>
    %28 = arith.addf %26, %27 : vector<8x32xf32>
    %cst_13 = arith.constant 0.000000e+00 : f32
    %29 = vector.broadcast %cst_13 : f32 to vector<8x32xf32>
    %30 = arith.maximumf %28, %29 : vector<8x32xf32>
    %31 = arith.truncf %30 : vector<8x32xf32> to vector<8x32xbf16>
    %c0_14 = arith.constant 0 : index
    %c0_15 = arith.constant 0 : index
    %32 = vector.load %arg4[%c0_14, %c0_15] : memref<32x64xbf16, #tpu.memory_space<vmem>>, vector<32x64xbf16>
    %c0_16 = arith.constant 0 : index
    %c0_17 = arith.constant 0 : index
    %33 = vector.load %arg5[%c0_16, %c0_17] : memref<1x64xf32, #tpu.memory_space<vmem>>, vector<1x64xf32>
    %c0_18 = arith.constant 0 : index
    %c0_19 = arith.constant 0 : index
    %34 = vector.load %arg6[%c0_18, %c0_19] : memref<1x64xf32, #tpu.memory_space<vmem>>, vector<1x64xf32>
    %cst_20 = arith.constant dense<0.000000e+00> : vector<8x64xf32>
    %35 = tpu.matmul %31, %32, %cst_20 {dimension_numbers = #tpu.dot_dimension_numbers<[1], [0], [0], [1], [0, 0, 1, 1], [], []>} : vector<8x32xbf16>, vector<32x64xbf16>, vector<8x64xf32> -> vector<8x64xf32>
    %cst_21 = arith.constant dense<0.000000e+00> : vector<64xf32>
    %36 = vector.multi_reduction <add>, %35, %cst_21 [0] : vector<8x64xf32> to vector<64xf32>
    %37 = vector.shape_cast %36 : vector<64xf32> to vector<1x64xf32>
    %cst_22 = arith.constant 8.000000e+00 : f32
    %38 = vector.broadcast %cst_22 : f32 to vector<1x64xf32>
    %39 = arith.divf %37, %38 : vector<1x64xf32>
    %40 = arith.mulf %35, %35 : vector<8x64xf32>
    %cst_23 = arith.constant dense<0.000000e+00> : vector<64xf32>
    %41 = vector.multi_reduction <add>, %40, %cst_23 [0] : vector<8x64xf32> to vector<64xf32>
    %42 = vector.shape_cast %41 : vector<64xf32> to vector<1x64xf32>
    %cst_24 = arith.constant 8.000000e+00 : f32
    %43 = vector.broadcast %cst_24 : f32 to vector<1x64xf32>
    %44 = arith.divf %42, %43 : vector<1x64xf32>
    %45 = arith.mulf %39, %39 : vector<1x64xf32>
    %46 = arith.subf %44, %45 : vector<1x64xf32>
    %cst_25 = arith.constant 0.000000e+00 : f32
    %47 = vector.broadcast %cst_25 : f32 to vector<1x64xf32>
    %48 = arith.maximumf %46, %47 : vector<1x64xf32>
    %cst_26 = arith.constant 9.99999974E-6 : f32
    %49 = vector.broadcast %cst_26 : f32 to vector<1x64xf32>
    %50 = arith.addf %48, %49 : vector<1x64xf32>
    %51 = math.rsqrt %50 : vector<1x64xf32>
    %52 = arith.mulf %33, %51 : vector<1x64xf32>
    %53 = arith.mulf %39, %52 : vector<1x64xf32>
    %54 = arith.subf %34, %53 : vector<1x64xf32>
    %55 = vector.broadcast %52 : vector<1x64xf32> to vector<8x64xf32>
    %56 = arith.mulf %35, %55 : vector<8x64xf32>
    %57 = vector.broadcast %54 : vector<1x64xf32> to vector<8x64xf32>
    %58 = arith.addf %56, %57 : vector<8x64xf32>
    %cst_27 = arith.constant 0.000000e+00 : f32
    %59 = vector.broadcast %cst_27 : f32 to vector<8x64xf32>
    %60 = arith.maximumf %58, %59 : vector<8x64xf32>
    %61 = arith.truncf %60 : vector<8x64xf32> to vector<8x64xbf16>
    %c0_28 = arith.constant 0 : index
    %c0_29 = arith.constant 0 : index
    %62 = vector.load %arg7[%c0_28, %c0_29] : memref<64x128xbf16, #tpu.memory_space<vmem>>, vector<64x128xbf16>
    %c0_30 = arith.constant 0 : index
    %c0_31 = arith.constant 0 : index
    %63 = vector.load %arg8[%c0_30, %c0_31] : memref<1x128xf32, #tpu.memory_space<vmem>>, vector<1x128xf32>
    %c0_32 = arith.constant 0 : index
    %c0_33 = arith.constant 0 : index
    %64 = vector.load %arg9[%c0_32, %c0_33] : memref<1x128xf32, #tpu.memory_space<vmem>>, vector<1x128xf32>
    %cst_34 = arith.constant dense<0.000000e+00> : vector<8x128xf32>
    %65 = tpu.matmul %61, %62, %cst_34 {dimension_numbers = #tpu.dot_dimension_numbers<[1], [0], [0], [1], [0, 0, 1, 1], [], []>} : vector<8x64xbf16>, vector<64x128xbf16>, vector<8x128xf32> -> vector<8x128xf32>
    %cst_35 = arith.constant dense<0.000000e+00> : vector<128xf32>
    %66 = vector.multi_reduction <add>, %65, %cst_35 [0] : vector<8x128xf32> to vector<128xf32>
    %67 = vector.shape_cast %66 : vector<128xf32> to vector<1x128xf32>
    %cst_36 = arith.constant 8.000000e+00 : f32
    %68 = vector.broadcast %cst_36 : f32 to vector<1x128xf32>
    %69 = arith.divf %67, %68 : vector<1x128xf32>
    %70 = arith.mulf %65, %65 : vector<8x128xf32>
    %cst_37 = arith.constant dense<0.000000e+00> : vector<128xf32>
    %71 = vector.multi_reduction <add>, %70, %cst_37 [0] : vector<8x128xf32> to vector<128xf32>
    %72 = vector.shape_cast %71 : vector<128xf32> to vector<1x128xf32>
    %cst_38 = arith.constant 8.000000e+00 : f32
    %73 = vector.broadcast %cst_38 : f32 to vector<1x128xf32>
    %74 = arith.divf %72, %73 : vector<1x128xf32>
    %75 = arith.mulf %69, %69 : vector<1x128xf32>
    %76 = arith.subf %74, %75 : vector<1x128xf32>
    %cst_39 = arith.constant 0.000000e+00 : f32
    %77 = vector.broadcast %cst_39 : f32 to vector<1x128xf32>
    %78 = arith.maximumf %76, %77 : vector<1x128xf32>
    %cst_40 = arith.constant 9.99999974E-6 : f32
    %79 = vector.broadcast %cst_40 : f32 to vector<1x128xf32>
    %80 = arith.addf %78, %79 : vector<1x128xf32>
    %81 = math.rsqrt %80 : vector<1x128xf32>
    %82 = arith.mulf %63, %81 : vector<1x128xf32>
    %83 = arith.mulf %69, %82 : vector<1x128xf32>
    %84 = arith.subf %64, %83 : vector<1x128xf32>
    %85 = vector.broadcast %82 : vector<1x128xf32> to vector<8x128xf32>
    %86 = arith.mulf %65, %85 : vector<8x128xf32>
    %87 = vector.broadcast %84 : vector<1x128xf32> to vector<8x128xf32>
    %88 = arith.addf %86, %87 : vector<8x128xf32>
    %cst_41 = arith.constant 0.000000e+00 : f32
    %89 = vector.broadcast %cst_41 : f32 to vector<8x128xf32>
    %90 = arith.maximumf %88, %89 : vector<8x128xf32>
    %91 = arith.truncf %90 : vector<8x128xf32> to vector<8x128xbf16>
    %c0_42 = arith.constant 0 : index
    %c0_43 = arith.constant 0 : index
    %92 = vector.load %arg10[%c0_42, %c0_43] : memref<128x256xbf16, #tpu.memory_space<vmem>>, vector<128x256xbf16>
    %c0_44 = arith.constant 0 : index
    %c0_45 = arith.constant 0 : index
    %93 = vector.load %arg11[%c0_44, %c0_45] : memref<1x256xf32, #tpu.memory_space<vmem>>, vector<1x256xf32>
    %c0_46 = arith.constant 0 : index
    %c0_47 = arith.constant 0 : index
    %94 = vector.load %arg12[%c0_46, %c0_47] : memref<1x256xf32, #tpu.memory_space<vmem>>, vector<1x256xf32>
    %cst_48 = arith.constant dense<0.000000e+00> : vector<8x256xf32>
    %95 = tpu.matmul %91, %92, %cst_48 {dimension_numbers = #tpu.dot_dimension_numbers<[1], [0], [0], [1], [0, 0, 1, 1], [], []>} : vector<8x128xbf16>, vector<128x256xbf16>, vector<8x256xf32> -> vector<8x256xf32>
    %cst_49 = arith.constant dense<0.000000e+00> : vector<256xf32>
    %96 = vector.multi_reduction <add>, %95, %cst_49 [0] : vector<8x256xf32> to vector<256xf32>
    %97 = vector.shape_cast %96 : vector<256xf32> to vector<1x256xf32>
    %cst_50 = arith.constant 8.000000e+00 : f32
    %98 = vector.broadcast %cst_50 : f32 to vector<1x256xf32>
    %99 = arith.divf %97, %98 : vector<1x256xf32>
    %100 = arith.mulf %95, %95 : vector<8x256xf32>
    %cst_51 = arith.constant dense<0.000000e+00> : vector<256xf32>
    %101 = vector.multi_reduction <add>, %100, %cst_51 [0] : vector<8x256xf32> to vector<256xf32>
    %102 = vector.shape_cast %101 : vector<256xf32> to vector<1x256xf32>
    %cst_52 = arith.constant 8.000000e+00 : f32
    %103 = vector.broadcast %cst_52 : f32 to vector<1x256xf32>
    %104 = arith.divf %102, %103 : vector<1x256xf32>
    %105 = arith.mulf %99, %99 : vector<1x256xf32>
    %106 = arith.subf %104, %105 : vector<1x256xf32>
    %cst_53 = arith.constant 0.000000e+00 : f32
    %107 = vector.broadcast %cst_53 : f32 to vector<1x256xf32>
    %108 = arith.maximumf %106, %107 : vector<1x256xf32>
    %cst_54 = arith.constant 9.99999974E-6 : f32
    %109 = vector.broadcast %cst_54 : f32 to vector<1x256xf32>
    %110 = arith.addf %108, %109 : vector<1x256xf32>
    %111 = math.rsqrt %110 : vector<1x256xf32>
    %112 = arith.mulf %93, %111 : vector<1x256xf32>
    %113 = arith.mulf %99, %112 : vector<1x256xf32>
    %114 = arith.subf %94, %113 : vector<1x256xf32>
    %115 = vector.broadcast %112 : vector<1x256xf32> to vector<8x256xf32>
    %116 = arith.mulf %95, %115 : vector<8x256xf32>
    %117 = vector.broadcast %114 : vector<1x256xf32> to vector<8x256xf32>
    %118 = arith.addf %116, %117 : vector<8x256xf32>
    %cst_55 = arith.constant 0.000000e+00 : f32
    %119 = vector.broadcast %cst_55 : f32 to vector<8x256xf32>
    %120 = arith.maximumf %118, %119 : vector<8x256xf32>
    %121 = arith.truncf %120 : vector<8x256xf32> to vector<8x256xbf16>
    %c0_56 = arith.constant 0 : index
    %c0_57 = arith.constant 0 : index
    %122 = vector.load %arg13[%c0_56, %c0_57] : memref<256x128xbf16, #tpu.memory_space<vmem>>, vector<256x128xbf16>
    %c0_58 = arith.constant 0 : index
    %c0_59 = arith.constant 0 : index
    %123 = vector.load %arg14[%c0_58, %c0_59] : memref<1x128xf32, #tpu.memory_space<vmem>>, vector<1x128xf32>
    %cst_60 = arith.constant dense<0.000000e+00> : vector<8x128xf32>
    %124 = tpu.matmul %121, %122, %cst_60 {dimension_numbers = #tpu.dot_dimension_numbers<[1], [0], [0], [1], [0, 0, 1, 1], [], []>} : vector<8x256xbf16>, vector<256x128xbf16>, vector<8x128xf32> -> vector<8x128xf32>
    %125 = vector.broadcast %123 : vector<1x128xf32> to vector<8x128xf32>
    %126 = arith.addf %124, %125 : vector<8x128xf32>
    %127 = arith.negf %126 : vector<8x128xf32>
    %128 = math.exp %127 : vector<8x128xf32>
    %cst_61 = arith.constant 1.000000e+00 : f32
    %129 = vector.broadcast %cst_61 : f32 to vector<8x128xf32>
    %130 = arith.addf %129, %128 : vector<8x128xf32>
    %131 = arith.divf %129, %130 : vector<8x128xf32>
    %c0_62 = arith.constant 0 : index
    %c0_63 = arith.constant 0 : index
    %132 = vector.load %arg15[%c0_62, %c0_63] : memref<8x128xf32, #tpu.memory_space<vmem>>, vector<8x128xf32>
    tpu.vector_store %arg15[%c0_62, %c0_63], %131 {strides = array<i32>} : memref<8x128xf32, #tpu.memory_space<vmem>>, vector<8x128xf32>,
    return
  }
}

</mosaic_0001>

<llo_original>
// kernel: generator_forward.1
$region0: #{generator_forward.1}
  #allocation0 [shape = 'u32[]', space=smem, size = 0x4, offset = 0x4, fixed_abs, tag = 'smem constant byte address 0x4 - core index']
  #allocation1 [shape = 'u32[144,128]{1,0:T(1,128)}', space=vmem, size = 0x12000, scoped, tag = 'internal scratch']
  %s0 = inlined_call_operand.vmem [shape: f32[8,128], index: 0, kind: input, shape index: {}]
  %s1 = inlined_call_operand.vmem [shape: bf16[128,32], index: 1, kind: input, shape index: {}]
  %s2 = inlined_call_operand.hbm [shape: f32[1,32], index: 2, kind: input, shape index: {}]
  %s3 = inlined_call_operand.hbm [shape: f32[1,32], index: 3, kind: input, shape index: {}]
  %s4 = inlined_call_operand.vmem [shape: bf16[32,64], index: 4, kind: input, shape index: {}]
  %s5 = inlined_call_operand.hbm [shape: f32[1,64], index: 5, kind: input, shape index: {}]
  %s6 = inlined_call_operand.hbm [shape: f32[1,64], index: 6, kind: input, shape index: {}]
  %s7 = inlined_call_operand.hbm [shape: bf16[64,128], index: 7, kind: input, shape index: {}]
  %s8 = inlined_call_operand.hbm [shape: f32[1,128], index: 8, kind: input, shape index: {}]
  %s9 = inlined_call_operand.hbm [shape: f32[1,128], index: 9, kind: input, shape index: {}]
  %s10 = inlined_call_operand.vmem [shape: bf16[128,256], index: 10, kind: input, shape index: {}]
  %s11 = inlined_call_operand.vmem [shape: f32[1,256], index: 11, kind: input, shape index: {}]
  %s12 = inlined_call_operand.hbm [shape: f32[1,256], index: 12, kind: input, shape index: {}]
  %s13 = inlined_call_operand.hbm [shape: bf16[256,128], index: 13, kind: input, shape index: {}]
  %s14 = inlined_call_operand.hbm [shape: f32[1,128], index: 14, kind: input, shape index: {}]
  %s15 = inlined_call_operand.hbm [shape: f32[8,128], index: 15, kind: output, shape index: {}]
  %s16 = sld [smem:[#allocation0]]
  $region110: #{generator_forward.1} parent=0
    _
  %s18 = ssub.s32 1, %s16
  %s19 = scalar_select 0, %s18, %s16
  $region1: #{generator_forward.1} parent=0
    #allocation2 [shape = 'u8[512]{0}', space=vmem, size = 0x400, scoped, tag = 'input window, operand 2, single buffered']
    #allocation3 [shape = 's32[1]{0}', space=sflag, size = 0x4, scoped, tag = 'scoped memory for generator_forward.1']
    #allocation4 [shape = 's32[1]{0}', space=sflag, size = 0x4, scoped, tag = 'scoped memory for generator_forward.1']
    #allocation5 [shape = 'u8[512]{0}', space=vmem, size = 0x400, scoped, tag = 'input window, operand 3, single buffered']
    #allocation6 [shape = 's32[1]{0}', space=sflag, size = 0x4, scoped, tag = 'scoped memory for generator_forward.1']
    #allocation7 [shape = 'u8[512]{0}', space=vmem, size = 0x400, scoped, tag = 'input window, operand 5, single buffered']
    #allocation8 [shape = 'u8[512]{0}', space=vmem, size = 0x400, scoped, tag = 'input window, operand 6, single buffered']
    #allocation9 [shape = 's32[1]{0}', space=sflag, size = 0x4, scoped, tag = 'scoped memory for generator_forward.1']
    #allocation10 [shape = 'u8[16384]{0}', space=vmem, size = 0x4000, scoped, tag = 'input window, operand 7, single buffered']
    #allocation11 [shape = 'u8[512]{0}', space=vmem, size = 0x400, scoped, tag = 'input window, operand 8, single buffered']
    #allocation12 [shape = 's32[1]{0}', space=sflag, size = 0x4, scoped, tag = 'scoped memory for generator_forward.1']
    #allocation13 [shape = 'u8[512]{0}', space=vmem, size = 0x400, scoped, tag = 'input window, operand 9, single buffered']
    #allocation14 [shape = 'u8[1024]{0}', space=vmem, size = 0x400, scoped, tag = 'input window, operand 12, single buffered']
    #allocation15 [shape = 's32[1]{0}', space=sflag, size = 0x4, scoped, tag = 'scoped memory for generator_forward.1']
    #allocation16 [shape = 'u8[65536]{0}', space=vmem, size = 0x10000, scoped, tag = 'input window, operand 13, single buffered']
    #allocation17 [shape = 'u8[512]{0}', space=vmem, size = 0x400, scoped, tag = 'input window, operand 14, single buffered']
    #allocation18 [shape = 's32[1]{0}', space=sflag, size = 0x4, scoped, tag = 'scoped memory for generator_forward.1']
    #allocation19 [shape = 'u8[4096]{0}', space=vmem, size = 0x1000, scoped, tag = 'output window, operand 0, single buffered']
    %20 = vsyncpa [#allocation3], 0
    %21 = vsyncpa [#allocation6], 0
    %22 = vsyncpa [#allocation9], 0
    %23 = vsyncpa [#allocation12], 0
    %24 = vsyncpa [#allocation15], 0
    %25 = vsyncpa [#allocation18], 0
    %26 = vsyncpa [#allocation4], 0
    // Predicated region
    $region2: #{generator_forward.1} parent=1 // pred_check
      _
    $region3: #{generator_forward.1} parent=1 // pred_check_branch
      %28 = sbr.rel (0) target = $region5
    $region4: #{generator_forward.1} parent=1 // pred_region
      _
    $region5: #{generator_forward.1} parent=1 // pred_fallthru
      _
    // Predicated region
    $region6: #{generator_forward.1} parent=1 // pred_check
      _
    $region7: #{generator_forward.1} parent=1 // pred_check_branch
      %30 = sbr.rel (0) target = $region9
    $region8: #{generator_forward.1} parent=1 // pred_region
      _
    $region9: #{generator_forward.1} parent=1 // pred_fallthru
      _
    // Predicated region
    $region10: #{generator_forward.1} parent=1 // pred_check
      _
    $region11: #{generator_forward.1} parent=1 // pred_check_branch
      %32 = sbr.rel (0) target = $region13
    $region12: #{generator_forward.1} parent=1 // pred_region
      %s34 = ssub.s32 16, 16
      %35 = vsyncadd [#allocation3], %s34
      %s37 = sshll.u32 [#allocation2], 4
      %s38 = int_to_ptr.vmem [resolvable:$true] %s37
      %40 = dma.hbm_to_vmem [thread:$0]  %s2, 16, %s38, [#allocation3]
    $region13: #{generator_forward.1} parent=1 // pred_fallthru
      _
    // Predicated region
    $region14: #{generator_forward.1} parent=1 // pred_check
      _
    $region15: #{generator_forward.1} parent=1 // pred_check_branch
      %42 = sbr.rel (0) target = $region17
    $region16: #{generator_forward.1} parent=1 // pred_region
      %s44 = ssub.s32 16, 16
      %45 = vsyncadd [#allocation6], %s44
      %s47 = sshll.u32 [#allocation5], 4
      %s48 = int_to_ptr.vmem [resolvable:$true] %s47
      %50 = dma.hbm_to_vmem [thread:$0]  %s3, 16, %s48, [#allocation6]
    $region17: #{generator_forward.1} parent=1 // pred_fallthru
      _
    // Predicated region
    $region18: #{generator_forward.1} parent=1 // pred_check
      _
    $region19: #{generator_forward.1} parent=1 // pred_check_branch
      %52 = sbr.rel (0) target = $region21
    $region20: #{generator_forward.1} parent=1 // pred_region
      _
    $region21: #{generator_forward.1} parent=1 // pred_fallthru
      _
    // Predicated region
    $region22: #{generator_forward.1} parent=1 // pred_check
      _
    $region23: #{generator_forward.1} parent=1 // pred_check_branch
      %54 = sbr.rel (0) target = $region25
    $region24: #{generator_forward.1} parent=1 // pred_region
      %s56 = ssub.s32 16, 16
      %57 = vsyncadd [#allocation6], %s56
      %s59 = sshll.u32 [#allocation7], 4
      %s60 = int_to_ptr.vmem [resolvable:$true] %s59
      %62 = dma.hbm_to_vmem [thread:$0]  %s5, 16, %s60, [#allocation6]
    $region25: #{generator_forward.1} parent=1 // pred_fallthru
      _
    // Predicated region
    $region26: #{generator_forward.1} parent=1 // pred_check
      _
    $region27: #{generator_forward.1} parent=1 // pred_check_branch
      %64 = sbr.rel (0) target = $region29
    $region28: #{generator_forward.1} parent=1 // pred_region
      %s66 = ssub.s32 16, 16
      %67 = vsyncadd [#allocation9], %s66
      %s69 = sshll.u32 [#allocation8], 4
      %s70 = int_to_ptr.vmem [resolvable:$true] %s69
      %72 = dma.hbm_to_vmem [thread:$0]  %s6, 16, %s70, [#allocation9]
    $region29: #{generator_forward.1} parent=1 // pred_fallthru
      _
    // Predicated region
    $region30: #{generator_forward.1} parent=1 // pred_check
      _
    $region31: #{generator_forward.1} parent=1 // pred_check_branch
      %74 = sbr.rel (0) target = $region33
    $region32: #{generator_forward.1} parent=1 // pred_region
      %s76 = ssub.s32 512, 512
      %77 = vsyncadd [#allocation9], %s76
      %s78 = sshll.u32 [#allocation10], 4
      %s79 = int_to_ptr.vmem [resolvable:$true] %s78
      %84 = dma.hbm_to_vmem [thread:$0]  %s7, 512, %s79, [#allocation9], 64, 64, 4
    $region33: #{generator_forward.1} parent=1 // pred_fallthru
      _
    // Predicated region
    $region34: #{generator_forward.1} parent=1 // pred_check
      _
    $region35: #{generator_forward.1} parent=1 // pred_check_branch
      %86 = sbr.rel (0) target = $region37
    $region36: #{generator_forward.1} parent=1 // pred_region
      %s88 = ssub.s32 16, 16
      %89 = vsyncadd [#allocation12], %s88
      %s91 = sshll.u32 [#allocation11], 4
      %s92 = int_to_ptr.vmem [resolvable:$true] %s91
      %94 = dma.hbm_to_vmem [thread:$0]  %s8, 16, %s92, [#allocation12]
    $region37: #{generator_forward.1} parent=1 // pred_fallthru
      _
    // Predicated region
    $region38: #{generator_forward.1} parent=1 // pred_check
      _
    $region39: #{generator_forward.1} parent=1 // pred_check_branch
      %96 = sbr.rel (0) target = $region41
    $region40: #{generator_forward.1} parent=1 // pred_region
      %s98 = ssub.s32 16, 16
      %99 = vsyncadd [#allocation12], %s98
      %s101 = sshll.u32 [#allocation13], 4
      %s102 = int_to_ptr.vmem [resolvable:$true] %s101
      %104 = dma.hbm_to_vmem [thread:$0]  %s9, 16, %s102, [#allocation12]
    $region41: #{generator_forward.1} parent=1 // pred_fallthru
      _
    // Predicated region
    $region42: #{generator_forward.1} parent=1 // pred_check
      _
    $region43: #{generator_forward.1} parent=1 // pred_check_branch
      %106 = sbr.rel (0) target = $region45
    $region44: #{generator_forward.1} parent=1 // pred_region
      _
    $region45: #{generator_forward.1} parent=1 // pred_fallthru
      _
    // Predicated region
    $region46: #{generator_forward.1} parent=1 // pred_check
      _
    $region47: #{generator_forward.1} parent=1 // pred_check_branch
      %108 = sbr.rel (0) target = $region49
    $region48: #{generator_forward.1} parent=1 // pred_region
      _
    $region49: #{generator_forward.1} parent=1 // pred_fallthru
      _
    // Predicated region
    $region50: #{generator_forward.1} parent=1 // pred_check
      _
    $region51: #{generator_forward.1} parent=1 // pred_check_branch
      %110 = sbr.rel (0) target = $region53
    $region52: #{generator_forward.1} parent=1 // pred_region
      %s112 = ssub.s32 32, 32
      %113 = vsyncadd [#allocation15], %s112
      %s115 = sshll.u32 [#allocation14], 4
      %s116 = int_to_ptr.vmem [resolvable:$true] %s115
      %118 = dma.hbm_to_vmem [thread:$0]  %s12, 32, %s116, [#allocation15]
    $region53: #{generator_forward.1} parent=1 // pred_fallthru
      _
    // Predicated region
    $region54: #{generator_forward.1} parent=1 // pred_check
      _
    $region55: #{generator_forward.1} parent=1 // pred_check_branch
      %120 = sbr.rel (0) target = $region57
    $region56: #{generator_forward.1} parent=1 // pred_region
      %s122 = ssub.s32 2048, 2048
      %123 = vsyncadd [#allocation15], %s122
      %s124 = sshll.u32 [#allocation16], 4
      %s125 = int_to_ptr.vmem [resolvable:$true] %s124
      %130 = dma.hbm_to_vmem [thread:$0]  %s13, 2048, %s125, [#allocation15], 64, 64, 4
    $region57: #{generator_forward.1} parent=1 // pred_fallthru
      _
    // Predicated region
    $region58: #{generator_forward.1} parent=1 // pred_check
      _
    $region59: #{generator_forward.1} parent=1 // pred_check_branch
      %132 = sbr.rel (0) target = $region61
    $region60: #{generator_forward.1} parent=1 // pred_region
      %s134 = ssub.s32 16, 16
      %135 = vsyncadd [#allocation18], %s134
      %s137 = sshll.u32 [#allocation17], 4
      %s138 = int_to_ptr.vmem [resolvable:$true] %s137
      %140 = dma.hbm_to_vmem [thread:$0]  %s14, 16, %s138, [#allocation18]
    $region61: #{generator_forward.1} parent=1 // pred_fallthru
      _
    // Predicated region
    $region62: #{generator_forward.1} parent=1 // pred_check
      _
    $region63: #{generator_forward.1} parent=1 // pred_check_branch
      %142 = sbr.rel (0) target = $region65
    $region64: #{generator_forward.1} parent=1 // pred_region
      %143 = dma.done [#allocation3], 16
    $region65: #{generator_forward.1} parent=1 // pred_fallthru
      _
    // Predicated region
    $region66: #{generator_forward.1} parent=1 // pred_check
      _
    $region67: #{generator_forward.1} parent=1 // pred_check_branch
      %145 = sbr.rel (0) target = $region69
    $region68: #{generator_forward.1} parent=1 // pred_region
      %146 = dma.done [#allocation6], 16
    $region69: #{generator_forward.1} parent=1 // pred_fallthru
      _
    // Predicated region
    $region70: #{generator_forward.1} parent=1 // pred_check
      _
    $region71: #{generator_forward.1} parent=1 // pred_check_branch
      %148 = sbr.rel (0) target = $region73
    $region72: #{generator_forward.1} parent=1 // pred_region
      %149 = dma.done [#allocation6], 16
    $region73: #{generator_forward.1} parent=1 // pred_fallthru
      _
    // Predicated region
    $region74: #{generator_forward.1} parent=1 // pred_check
      _
    $region75: #{generator_forward.1} parent=1 // pred_check_branch
      %151 = sbr.rel (0) target = $region77
    $region76: #{generator_forward.1} parent=1 // pred_region
      %152 = dma.done [#allocation9], 16
    $region77: #{generator_forward.1} parent=1 // pred_fallthru
      _
    // Predicated region
    $region78: #{generator_forward.1} parent=1 // pred_check
      _
    $region79: #{generator_forward.1} parent=1 // pred_check_branch
      %154 = sbr.rel (0) target = $region81
    $region80: #{generator_forward.1} parent=1 // pred_region
      %155 = dma.done [#allocation9], 512
    $region81: #{generator_forward.1} parent=1 // pred_fallthru
      _
    // Predicated region
    $region82: #{generator_forward.1} parent=1 // pred_check
      _
    $region83: #{generator_forward.1} parent=1 // pred_check_branch
      %157 = sbr.rel (0) target = $region85
    $region84: #{generator_forward.1} parent=1 // pred_region
      %158 = dma.done [#allocation12], 16
    $region85: #{generator_forward.1} parent=1 // pred_fallthru
      _
    // Predicated region
    $region86: #{generator_forward.1} parent=1 // pred_check
      _
    $region87: #{generator_forward.1} parent=1 // pred_check_branch
      %160 = sbr.rel (0) target = $region89
    $region88: #{generator_forward.1} parent=1 // pred_region
      %161 = dma.done [#allocation12], 16
    $region89: #{generator_forward.1} parent=1 // pred_fallthru
      _
    // Predicated region
    $region90: #{generator_forward.1} parent=1 // pred_check
      _
    $region91: #{generator_forward.1} parent=1 // pred_check_branch
      %163 = sbr.rel (0) target = $region93
    $region92: #{generator_forward.1} parent=1 // pred_region
      %164 = dma.done [#allocation15], 32
    $region93: #{generator_forward.1} parent=1 // pred_fallthru
      _
    // Predicated region
    $region94: #{generator_forward.1} parent=1 // pred_check
      _
    $region95: #{generator_forward.1} parent=1 // pred_check_branch
      %166 = sbr.rel (0) target = $region97
    $region96: #{generator_forward.1} parent=1 // pred_region
      %167 = dma.done [#allocation15], 2048
    $region97: #{generator_forward.1} parent=1 // pred_fallthru
      _
    // Predicated region
    $region98: #{generator_forward.1} parent=1 // pred_check
      _
    $region99: #{generator_forward.1} parent=1 // pred_check_branch
      %169 = sbr.rel (0) target = $region101
    $region100: #{generator_forward.1} parent=1 // pred_region
      %170 = dma.done [#allocation18], 16
    $region101: #{generator_forward.1} parent=1 // pred_fallthru
      _
    %v172 = vld [vmem:[%s0] sm:$0xff]
    %v173 = vpack.c.bf16 %v172, %v172
    %v174 = vld [vmem:[%s1] sm:$0xf]
    %v175 = vld [vmem:[%s1 + $0x4] sm:$0xf]
    %v176 = vld [vmem:[%s1 + $0x8] sm:$0xf]
    %v177 = vld [vmem:[%s1 + $0xc] sm:$0xf]
    %v178 = vld [vmem:[%s1 + $0x10] sm:$0xf]
    %v179 = vld [vmem:[%s1 + $0x14] sm:$0xf]
    %v180 = vld [vmem:[%s1 + $0x18] sm:$0xf]
    %v181 = vld [vmem:[%s1 + $0x1c] sm:$0xf]
    %v182 = vld [vmem:[%s1 + $0x20] sm:$0xf]
    %v183 = vld [vmem:[%s1 + $0x24] sm:$0xf]
    %v184 = vld [vmem:[%s1 + $0x28] sm:$0xf]
    %v185 = vld [vmem:[%s1 + $0x2c] sm:$0xf]
    %v186 = vld [vmem:[%s1 + $0x30] sm:$0xf]
    %v187 = vld [vmem:[%s1 + $0x34] sm:$0xf]
    %v188 = vld [vmem:[%s1 + $0x38] sm:$0xf]
    %v189 = vld [vmem:[%s1 + $0x3c] sm:$0xf]
    %v190 = vld [vmem:[#allocation2] sm:$0x1]
    %v191 = vld [vmem:[#allocation5] sm:$0x1]
    %v208 = vunpack.c.l.b16 %v174
    %v209 = vunpack.c.l.b16 %v175
    %v210 = vunpack.c.l.b16 %v176
    %v211 = vunpack.c.l.b16 %v177
    %v212 = vunpack.c.l.b16 %v178
    %v213 = vunpack.c.l.b16 %v179
    %v214 = vunpack.c.l.b16 %v180
    %v215 = vunpack.c.l.b16 %v181
    %v216 = vunpack.c.l.b16 %v182
    %v217 = vunpack.c.l.b16 %v183
    %v218 = vunpack.c.l.b16 %v184
    %v219 = vunpack.c.l.b16 %v185
    %v220 = vunpack.c.l.b16 %v186
    %v221 = vunpack.c.l.b16 %v187
    %v222 = vunpack.c.l.b16 %v188
    %v223 = vunpack.c.l.b16 %v189
    %v224 = vpack.c.b16 %v209, %v208
    %v225 = vpack.c.b16 %v211, %v210
    %v226 = vpack.c.b16 %v213, %v212
    %v227 = vpack.c.b16 %v215, %v214
    %v228 = vpack.c.b16 %v217, %v216
    %v229 = vpack.c.b16 %v219, %v218
    %v230 = vpack.c.b16 %v221, %v220
    %v231 = vpack.c.b16 %v223, %v222
    %240 = vmatprep.subr.bf16.mxu0 0
    %241 = vmatpush1.bf16.msra.mxu0 %v224
    %242 = vmatprep.subr.bf16.mxu0 0
    %243 = vmatpush1.bf16.msra.mxu0 %v225
    %244 = vmatprep.subr.bf16.mxu0 0
    %245 = vmatpush1.bf16.msra.mxu0 %v226
    %246 = vmatprep.subr.bf16.mxu0 0
    %247 = vmatpush1.bf16.msra.mxu0 %v227
    %248 = vmatprep.subr.bf16.mxu0 0
    %249 = vmatpush1.bf16.msra.mxu0 %v228
    %250 = vmatprep.subr.bf16.mxu0 0
    %251 = vmatpush1.bf16.msra.mxu0 %v229
    %252 = vmatprep.subr.bf16.mxu0 0
    %253 = vmatpush1.bf16.msra.mxu0 %v230
    %254 = vmatprep.subr.bf16.mxu0 0
    %255 = vmatpush1.bf16.msra.mxu0 %v231
    %256 = vmatprep.subr.bf16.mxu0 0
    %257 = vmatpush1.bf16.msra.mxu0 0
    %258 = vmatprep.subr.bf16.mxu0 0
    %259 = vmatpush1.bf16.msra.mxu0 0
    %260 = vmatprep.subr.bf16.mxu0 0
    %261 = vmatpush1.bf16.msra.mxu0 0
    %262 = vmatprep.subr.bf16.mxu0 0
    %263 = vmatpush1.bf16.msra.mxu0 0
    %264 = vmatprep.subr.bf16.mxu0 0
    %265 = vmatpush1.bf16.msra.mxu0 0
    %266 = vmatprep.subr.bf16.mxu0 0
    %267 = vmatpush1.bf16.msra.mxu0 0
    %268 = vmatprep.subr.bf16.mxu0 0
    %269 = vmatpush1.bf16.msra.mxu0 0
    %270 = vmatprep.subr.bf16.mxu0 0
    %271 = vmatpush1.bf16.msra.mxu0 0
    %272 = vmatprep.mubr.bf16.mxu0 0
    %273 = vmatmul.mubr.bf16.gmra.mrb[0].mxu0 %v173
    %v274 = vpop.f32.mrb[0].mxu0
    %v275 = vadd.f32 0.0, %v274
    %v276 = vpop.f32.mrb[0].mxu0
    %v277 = vpop.f32.mrb[0].mxu0
    %v278 = vpop.f32.mrb[0].mxu0
    %279 = vdwg.mxu0
    %vm280 = vcmask 261120
    %v281 = vsel %vm280, %v275, 0.0
    %v282 = vrot.slane %v281, 4
    %v283 = vadd.f32 %v281, %v282
    %v284 = vrot.slane %v283, 2
    %v285 = vadd.f32 %v283, %v284
    %v286 = vrot.slane %v285, 1
    %v287 = vadd.f32 %v285, %v286
    %v288 = vrcp.pop 8.0
    %v289 = vmul.f32 %v287, %v288
    %v290 = vmul.f32 %v275, %v275
    %v291 = vsel %vm280, %v290, 0.0
    %v292 = vrot.slane %v291, 4
    %v293 = vadd.f32 %v291, %v292
    %v294 = vrot.slane %v293, 2
    %v295 = vadd.f32 %v293, %v294
    %v296 = vrot.slane %v295, 1
    %v297 = vadd.f32 %v295, %v296
    %v298 = vmul.f32 %v297, %v288
    %v299 = vmul.f32 %v289, %v289
    %v300 = vsub.f32 %v298, %v299
    %v301 = vmax.f32 %v300, 0.0
    %v302 = vadd.f32 %v301, 1e-05
    %v303 = vrsqrt.pop %v302
    %v304 = vmul.f32 %v190, %v303
    %v305 = vmul.f32 %v289, %v304
    %v306 = vsub.f32 %v191, %v305
    %v308 = vlaneseq
    %v309 = vshrl.u32 %v308, 7
    %v310 = vsub.s32 0, %v309
    %v311 = vrot.slane %v304, %v310
    %v313 = vmul.f32 %v275, %v311
    %v315 = vlaneseq
    %v316 = vshrl.u32 %v315, 7
    %v317 = vsub.s32 0, %v316
    %v318 = vrot.slane %v306, %v317
    %v320 = vadd.f32 %v313, %v318
    %v321 = vmax.f32 %v320, 0.0
    %v322 = vpack.c.bf16 %v321, %v321
    %v323 = vld [vmem:[%s4] sm:$0xf]
    %v324 = vld [vmem:[%s4 + $0x4] sm:$0xf]
    %v325 = vld [vmem:[%s4 + $0x8] sm:$0xf]
    %v326 = vld [vmem:[%s4 + $0xc] sm:$0xf]
    %v327 = vld [vmem:[#allocation7] sm:$0x1]
    %v328 = vld [vmem:[#allocation8] sm:$0x1]
    %v333 = vunpack.c.l.b16 %v323
    %v334 = vunpack.c.l.b16 %v324
    %v335 = vunpack.c.l.b16 %v325
    %v336 = vunpack.c.l.b16 %v326
    %v337 = vpack.c.b16 %v334, %v333
    %v338 = vpack.c.b16 %v336, %v335
    %v342 = vsel %vm280, %v322, 0
    %344 = vmatprep.subr.bf16.mxu0 0
    %345 = vmatpush1.bf16.msra.mxu0 %v337
    %346 = vmatprep.subr.bf16.mxu0 0
    %347 = vmatpush1.bf16.msra.mxu0 %v338
    %348 = vmatprep.subr.bf16.mxu0 0
    %349 = vmatpush1.bf16.msra.mxu0 0
    %350 = vmatprep.subr.bf16.mxu0 0
    %351 = vmatpush1.bf16.msra.mxu0 0
    %352 = vmatprep.subr.bf16.mxu0 0
    %353 = vmatpush1.bf16.msra.mxu0 0
    %354 = vmatprep.subr.bf16.mxu0 0
    %355 = vmatpush1.bf16.msra.mxu0 0
    %356 = vmatprep.subr.bf16.mxu0 0
    %357 = vmatpush1.bf16.msra.mxu0 0
    %358 = vmatprep.subr.bf16.mxu0 0
    %359 = vmatpush1.bf16.msra.mxu0 0
    %360 = vmatprep.subr.bf16.mxu0 0
    %361 = vmatpush1.bf16.msra.mxu0 0
    %362 = vmatprep.subr.bf16.mxu0 0
    %363 = vmatpush1.bf16.msra.mxu0 0
    %364 = vmatprep.subr.bf16.mxu0 0
    %365 = vmatpush1.bf16.msra.mxu0 0
    %366 = vmatprep.subr.bf16.mxu0 0
    %367 = vmatpush1.bf16.msra.mxu0 0
    %368 = vmatprep.subr.bf16.mxu0 0
    %369 = vmatpush1.bf16.msra.mxu0 0
    %370 = vmatprep.subr.bf16.mxu0 0
    %371 = vmatpush1.bf16.msra.mxu0 0
    %372 = vmatprep.subr.bf16.mxu0 0
    %373 = vmatpush1.bf16.msra.mxu0 0
    %374 = vmatprep.subr.bf16.mxu0 0
    %375 = vmatpush1.bf16.msra.mxu0 0
    %376 = vmatprep.mubr.bf16.mxu0 0
    %377 = vmatmul.mubr.bf16.gmra.mrb[0].mxu0 %v342
    %v378 = vpop.f32.mrb[0].mxu0
    %v379 = vadd.f32 0.0, %v378
    %v380 = vpop.f32.mrb[0].mxu0
    %v381 = vpop.f32.mrb[0].mxu0
    %v382 = vpop.f32.mrb[0].mxu0
    %383 = vdwg.mxu0
    %vm384 = vcmask 523264
    %v385 = vsel %vm384, %v379, 0.0
    %v386 = vrot.slane %v385, 4
    %v387 = vadd.f32 %v385, %v386
    %v388 = vrot.slane %v387, 2
    %v389 = vadd.f32 %v387, %v388
    %v390 = vrot.slane %v389, 1
    %v391 = vadd.f32 %v389, %v390
    %v392 = vmul.f32 %v391, %v288
    %v393 = vmul.f32 %v379, %v379
    %v394 = vsel %vm384, %v393, 0.0
    %v395 = vrot.slane %v394, 4
    %v396 = vadd.f32 %v394, %v395
    %v397 = vrot.slane %v396, 2
    %v398 = vadd.f32 %v396, %v397
    %v399 = vrot.slane %v398, 1
    %v400 = vadd.f32 %v398, %v399
    %v401 = vmul.f32 %v400, %v288
    %v402 = vmul.f32 %v392, %v392
    %v403 = vsub.f32 %v401, %v402
    %v404 = vmax.f32 %v403, 0.0
    %v405 = vadd.f32 %v404, 1e-05
    %v406 = vrsqrt.pop %v405
    %v407 = vmul.f32 %v327, %v406
    %v408 = vmul.f32 %v392, %v407
    %v409 = vsub.f32 %v328, %v408
    %v411 = vlaneseq
    %v412 = vshrl.u32 %v411, 7
    %v413 = vsub.s32 0, %v412
    %v414 = vrot.slane %v407, %v413
    %v416 = vmul.f32 %v379, %v414
    %v418 = vlaneseq
    %v419 = vshrl.u32 %v418, 7
    %v420 = vsub.s32 0, %v419
    %v421 = vrot.slane %v409, %v420
    %v423 = vadd.f32 %v416, %v421
    %v424 = vmax.f32 %v423, 0.0
    %v425 = vpack.c.bf16 %v424, %v424
    %v426 = vld [vmem:[#allocation10] sm:$0xf]
    %v427 = vld [vmem:[#allocation10 + $0x4] sm:$0xf]
    %v428 = vld [vmem:[#allocation10 + $0x8] sm:$0xf]
    %v429 = vld [vmem:[#allocation10 + $0xc] sm:$0xf]
    %v430 = vld [vmem:[#allocation10 + $0x10] sm:$0xf]
    %v431 = vld [vmem:[#allocation10 + $0x14] sm:$0xf]
    %v432 = vld [vmem:[#allocation10 + $0x18] sm:$0xf]
    %v433 = vld [vmem:[#allocation10 + $0x1c] sm:$0xf]
    %v434 = vld [vmem:[#allocation11] sm:$0x1]
    %v435 = vld [vmem:[#allocation13] sm:$0x1]
    %v444 = vunpack.c.l.b16 %v426
    %v445 = vunpack.c.l.b16 %v427
    %v446 = vunpack.c.l.b16 %v428
    %v447 = vunpack.c.l.b16 %v429
    %v448 = vunpack.c.l.b16 %v430
    %v449 = vunpack.c.l.b16 %v431
    %v450 = vunpack.c.l.b16 %v432
    %v451 = vunpack.c.l.b16 %v433
    %v452 = vpack.c.b16 %v445, %v444
    %v453 = vpack.c.b16 %v447, %v446
    %v454 = vpack.c.b16 %v449, %v448
    %v455 = vpack.c.b16 %v451, %v450
    %v461 = vsel %vm384, %v425, 0
    %463 = vmatprep.subr.bf16.mxu0 0
    %464 = vmatpush1.bf16.msra.mxu0 %v452
    %465 = vmatprep.subr.bf16.mxu0 0
    %466 = vmatpush1.bf16.msra.mxu0 %v453
    %467 = vmatprep.subr.bf16.mxu0 0
    %468 = vmatpush1.bf16.msra.mxu0 %v454
    %469 = vmatprep.subr.bf16.mxu0 0
    %470 = vmatpush1.bf16.msra.mxu0 %v455
    %471 = vmatprep.subr.bf16.mxu0 0
    %472 = vmatpush1.bf16.msra.mxu0 0
    %473 = vmatprep.subr.bf16.mxu0 0
    %474 = vmatpush1.bf16.msra.mxu0 0
    %475 = vmatprep.subr.bf16.mxu0 0
    %476 = vmatpush1.bf16.msra.mxu0 0
    %477 = vmatprep.subr.bf16.mxu0 0
    %478 = vmatpush1.bf16.msra.mxu0 0
    %479 = vmatprep.subr.bf16.mxu0 0
    %480 = vmatpush1.bf16.msra.mxu0 0
    %481 = vmatprep.subr.bf16.mxu0 0
    %482 = vmatpush1.bf16.msra.mxu0 0
    %483 = vmatprep.subr.bf16.mxu0 0
    %484 = vmatpush1.bf16.msra.mxu0 0
    %485 = vmatprep.subr.bf16.mxu0 0
    %486 = vmatpush1.bf16.msra.mxu0 0
    %487 = vmatprep.subr.bf16.mxu0 0
    %488 = vmatpush1.bf16.msra.mxu0 0
    %489 = vmatprep.subr.bf16.mxu0 0
    %490 = vmatpush1.bf16.msra.mxu0 0
    %491 = vmatprep.subr.bf16.mxu0 0
    %492 = vmatpush1.bf16.msra.mxu0 0
    %493 = vmatprep.subr.bf16.mxu0 0
    %494 = vmatpush1.bf16.msra.mxu0 0
    %495 = vmatprep.mubr.bf16.mxu0 0
    %496 = vmatmul.mubr.bf16.gmra.mrb[0].mxu0 %v461
    %v497 = vpop.f32.mrb[0].mxu0
    %v498 = vadd.f32 0.0, %v497
    %v499 = vpop.f32.mrb[0].mxu0
    %v500 = vpop.f32.mrb[0].mxu0
    %v501 = vpop.f32.mrb[0].mxu0
    %502 = vdwg.mxu0
    %v503 = vrot.slane %v498, 4
    %v504 = vadd.f32 %v498, %v503
    %v505 = vrot.slane %v504, 2
    %v506 = vadd.f32 %v504, %v505
    %v507 = vrot.slane %v506, 1
    %v508 = vadd.f32 %v506, %v507
    %v509 = vmul.f32 %v508, %v288
    %v510 = vmul.f32 %v498, %v498
    %v511 = vrot.slane %v510, 4
    %v512 = vadd.f32 %v510, %v511
    %v513 = vrot.slane %v512, 2
    %v514 = vadd.f32 %v512, %v513
    %v515 = vrot.slane %v514, 1
    %v516 = vadd.f32 %v514, %v515
    %v517 = vmul.f32 %v516, %v288
    %v518 = vmul.f32 %v509, %v509
    %v519 = vsub.f32 %v517, %v518
    %v520 = vmax.f32 %v519, 0.0
    %v521 = vadd.f32 %v520, 1e-05
    %v522 = vrsqrt.pop %v521
    %v523 = vmul.f32 %v434, %v522
    %v524 = vmul.f32 %v509, %v523
    %v525 = vsub.f32 %v435, %v524
    %v527 = vlaneseq
    %v528 = vshrl.u32 %v527, 7
    %v529 = vsub.s32 0, %v528
    %v530 = vrot.slane %v523, %v529
    %v532 = vmul.f32 %v498, %v530
    %v534 = vlaneseq
    %v535 = vshrl.u32 %v534, 7
    %v536 = vsub.s32 0, %v535
    %v537 = vrot.slane %v525, %v536
    %v539 = vadd.f32 %v532, %v537
    %v540 = vmax.f32 %v539, 0.0
    %v541 = vpack.c.bf16 %v540, %v540
    %v542 = vld [vmem:[%s10] sm:$0xff]
    %v543 = vld [vmem:[%s10 + $0x8] sm:$0xff]
    %v544 = vld [vmem:[%s10 + $0x10] sm:$0xff]
    %v545 = vld [vmem:[%s10 + $0x18] sm:$0xff]
    %v546 = vld [vmem:[%s10 + $0x20] sm:$0xff]
    %v547 = vld [vmem:[%s10 + $0x28] sm:$0xff]
    %v548 = vld [vmem:[%s10 + $0x30] sm:$0xff]
    %v549 = vld [vmem:[%s10 + $0x38] sm:$0xff]
    %v550 = vld [vmem:[%s10 + $0x40] sm:$0xff]
    %v551 = vld [vmem:[%s10 + $0x48] sm:$0xff]
    %v552 = vld [vmem:[%s10 + $0x50] sm:$0xff]
    %v553 = vld [vmem:[%s10 + $0x58] sm:$0xff]
    %v554 = vld [vmem:[%s10 + $0x60] sm:$0xff]
    %v555 = vld [vmem:[%s10 + $0x68] sm:$0xff]
    %v556 = vld [vmem:[%s10 + $0x70] sm:$0xff]
    %v557 = vld [vmem:[%s10 + $0x78] sm:$0xff]
    %v558 = vld [vmem:[%s11] sm:$0x3]
    %v559 = vld [vmem:[#allocation14] sm:$0x3]
    %v576 = vunpack.c.l.b16 %v542
    %v577 = vunpack.c.h.b16 %v542
    %v578 = vunpack.c.l.b16 %v543
    %v579 = vunpack.c.h.b16 %v543
    %v580 = vunpack.c.l.b16 %v544
    %v581 = vunpack.c.h.b16 %v544
    %v582 = vunpack.c.l.b16 %v545
    %v583 = vunpack.c.h.b16 %v545
    %v584 = vunpack.c.l.b16 %v546
    %v585 = vunpack.c.h.b16 %v546
    %v586 = vunpack.c.l.b16 %v547
    %v587 = vunpack.c.h.b16 %v547
    %v588 = vunpack.c.l.b16 %v548
    %v589 = vunpack.c.h.b16 %v548
    %v590 = vunpack.c.l.b16 %v549
    %v591 = vunpack.c.h.b16 %v549
    %v592 = vunpack.c.l.b16 %v550
    %v593 = vunpack.c.h.b16 %v550
    %v594 = vunpack.c.l.b16 %v551
    %v595 = vunpack.c.h.b16 %v551
    %v596 = vunpack.c.l.b16 %v552
    %v597 = vunpack.c.h.b16 %v552
    %v598 = vunpack.c.l.b16 %v553
    %v599 = vunpack.c.h.b16 %v553
    %v600 = vunpack.c.l.b16 %v554
    %v601 = vunpack.c.h.b16 %v554
    %v602 = vunpack.c.l.b16 %v555
    %v603 = vunpack.c.h.b16 %v555
    %v604 = vunpack.c.l.b16 %v556
    %v605 = vunpack.c.h.b16 %v556
    %v606 = vunpack.c.l.b16 %v557
    %v607 = vunpack.c.h.b16 %v557
    %v608 = vpack.c.b16 %v578, %v576
    %v609 = vpack.c.b16 %v579, %v577
    %v610 = vpack.c.b16 %v582, %v580
    %v611 = vpack.c.b16 %v583, %v581
    %v612 = vpack.c.b16 %v586, %v584
    %v613 = vpack.c.b16 %v587, %v585
    %v614 = vpack.c.b16 %v590, %v588
    %v615 = vpack.c.b16 %v591, %v589
    %v616 = vpack.c.b16 %v594, %v592
    %v617 = vpack.c.b16 %v595, %v593
    %v618 = vpack.c.b16 %v598, %v596
    %v619 = vpack.c.b16 %v599, %v597
    %v620 = vpack.c.b16 %v602, %v600
    %v621 = vpack.c.b16 %v603, %v601
    %v622 = vpack.c.b16 %v606, %v604
    %v623 = vpack.c.b16 %v607, %v605
    %640 = vmatprep.subr.bf16.mxu0 %v609
    %641 = vmatpush1.bf16.msra.mxu0 %v608
    %642 = vmatprep.subr.bf16.mxu0 %v611
    %643 = vmatpush1.bf16.msra.mxu0 %v610
    %644 = vmatprep.subr.bf16.mxu0 %v613
    %645 = vmatpush1.bf16.msra.mxu0 %v612
    %646 = vmatprep.subr.bf16.mxu0 %v615
    %647 = vmatpush1.bf16.msra.mxu0 %v614
    %648 = vmatprep.subr.bf16.mxu0 %v617
    %649 = vmatpush1.bf16.msra.mxu0 %v616
    %650 = vmatprep.subr.bf16.mxu0 %v619
    %651 = vmatpush1.bf16.msra.mxu0 %v618
    %652 = vmatprep.subr.bf16.mxu0 %v621
    %653 = vmatpush1.bf16.msra.mxu0 %v620
    %654 = vmatprep.subr.bf16.mxu0 %v623
    %655 = vmatpush1.bf16.msra.mxu0 %v622
    %656 = vmatprep.subr.bf16.mxu0 0
    %657 = vmatpush1.bf16.msra.mxu0 0
    %658 = vmatprep.subr.bf16.mxu0 0
    %659 = vmatpush1.bf16.msra.mxu0 0
    %660 = vmatprep.subr.bf16.mxu0 0
    %661 = vmatpush1.bf16.msra.mxu0 0
    %662 = vmatprep.subr.bf16.mxu0 0
    %663 = vmatpush1.bf16.msra.mxu0 0
    %664 = vmatprep.subr.bf16.mxu0 0
    %665 = vmatpush1.bf16.msra.mxu0 0
    %666 = vmatprep.subr.bf16.mxu0 0
    %667 = vmatpush1.bf16.msra.mxu0 0
    %668 = vmatprep.subr.bf16.mxu0 0
    %669 = vmatpush1.bf16.msra.mxu0 0
    %670 = vmatprep.subr.bf16.mxu0 0
    %671 = vmatpush1.bf16.msra.mxu0 0
    %672 = vmatprep.mubr.bf16.mxu0 0
    %673 = vmatmul.mubr.bf16.gmra.mrb[0].mxu0 %v541
    %v674 = vpop.f32.mrb[0].mxu0
    %v675 = vadd.f32 0.0, %v674
    %v676 = vpop.f32.mrb[0].mxu0
    %v677 = vadd.f32 0.0, %v676
    %v678 = vpop.f32.mrb[0].mxu0
    %v679 = vpop.f32.mrb[0].mxu0
    %680 = vdwg.mxu0
    %v681 = vrot.slane %v675, 4
    %v682 = vadd.f32 %v675, %v681
    %v683 = vrot.slane %v682, 2
    %v684 = vadd.f32 %v682, %v683
    %v685 = vrot.slane %v684, 1
    %v686 = vadd.f32 %v684, %v685
    %v687 = vrot.slane %v677, 4
    %v688 = vadd.f32 %v677, %v687
    %v689 = vrot.slane %v688, 2
    %v690 = vadd.f32 %v688, %v689
    %v691 = vrot.slane %v690, 1
    %v692 = vadd.f32 %v690, %v691
    %v693 = vmul.f32 %v686, %v288
    %v694 = vmul.f32 %v692, %v288
    %v695 = vmul.f32 %v675, %v675
    %v696 = vmul.f32 %v677, %v677
    %v697 = vrot.slane %v695, 4
    %v698 = vadd.f32 %v695, %v697
    %v699 = vrot.slane %v698, 2
    %v700 = vadd.f32 %v698, %v699
    %v701 = vrot.slane %v700, 1
    %v702 = vadd.f32 %v700, %v701
    %v703 = vrot.slane %v696, 4
    %v704 = vadd.f32 %v696, %v703
    %v705 = vrot.slane %v704, 2
    %v706 = vadd.f32 %v704, %v705
    %v707 = vrot.slane %v706, 1
    %v708 = vadd.f32 %v706, %v707
    %v709 = vmul.f32 %v702, %v288
    %v710 = vmul.f32 %v708, %v288
    %v711 = vmul.f32 %v693, %v693
    %v712 = vmul.f32 %v694, %v694
    %v713 = vsub.f32 %v709, %v711
    %v714 = vsub.f32 %v710, %v712
    %v715 = vmax.f32 %v713, 0.0
    %v716 = vmax.f32 %v714, 0.0
    %v717 = vadd.f32 %v715, 1e-05
    %v718 = vadd.f32 %v716, 1e-05
    %v719 = vrsqrt.pop %v717
    %v720 = vrsqrt.pop %v718
    %v723 = vcombine.low %v719, %v720
    %v725 = vunpack.c.l.s4 1966171168
    %v726 = vunpack.c.0.s8 %v725
    %v727 = vlaneseq
    %v728 = vshrl.u32 %v727, 7
    %v729 = vsub.s32 %v726, %v728
    %v730 = vrot.slane %v723, %v729
    %v732 = vunpack.c.l.s4 1966171168
    %v733 = vunpack.c.0.s8 %v732
    %v734 = vlaneseq
    %v735 = vshrl.u32 %v734, 7
    %v736 = vsub.s32 %v733, %v735
    %v737 = vrot.slane %v730, %v736
    %v739 = vmul.f32 %v558, %v737
    %v741 = vlaneseq
    %v742 = vshrl.u32 %v741, 7
    %v743 = vsub.s32 0, %v742
    %v744 = vrot.slane %v739, %v743
    %v745 = vlaneseq
    %v746 = vshrl.u32 %v745, 7
    %v747 = vsub.s32 1, %v746
    %v748 = vrot.slane %v739, %v747
    %v751 = vmul.f32 %v693, %v744
    %v752 = vmul.f32 %v694, %v748
    %v755 = vcombine.low %v751, %v752
    %v757 = vunpack.c.l.s4 1966171168
    %v758 = vunpack.c.0.s8 %v757
    %v759 = vlaneseq
    %v760 = vshrl.u32 %v759, 7
    %v761 = vsub.s32 %v758, %v760
    %v762 = vrot.slane %v755, %v761
    %v764 = vunpack.c.l.s4 1966171168
    %v765 = vunpack.c.0.s8 %v764
    %v766 = vlaneseq
    %v767 = vshrl.u32 %v766, 7
    %v768 = vsub.s32 %v765, %v767
    %v769 = vrot.slane %v762, %v768
    %v771 = vsub.f32 %v559, %v769
    %v772 = vmul.f32 %v675, %v744
    %v773 = vmul.f32 %v677, %v748
    %v775 = vlaneseq
    %v776 = vshrl.u32 %v775, 7
    %v777 = vsub.s32 0, %v776
    %v778 = vrot.slane %v771, %v777
    %v779 = vlaneseq
    %v780 = vshrl.u32 %v779, 7
    %v781 = vsub.s32 1, %v780
    %v782 = vrot.slane %v771, %v781
    %v785 = vadd.f32 %v772, %v778
    %v786 = vadd.f32 %v773, %v782
    %v787 = vmax.f32 %v785, 0.0
    %v788 = vmax.f32 %v786, 0.0
    %v789 = vpack.c.bf16 %v787, %v787
    %v790 = vpack.c.bf16 %v788, %v788
    %v791 = vld [vmem:[#allocation16] sm:$0xf]
    %v792 = vld [vmem:[#allocation16 + $0x4] sm:$0xf]
    %v793 = vld [vmem:[#allocation16 + $0x8] sm:$0xf]
    %v794 = vld [vmem:[#allocation16 + $0xc] sm:$0xf]
    %v795 = vld [vmem:[#allocation16 + $0x10] sm:$0xf]
    %v796 = vld [vmem:[#allocation16 + $0x14] sm:$0xf]
    %v797 = vld [vmem:[#allocation16 + $0x18] sm:$0xf]
    %v798 = vld [vmem:[#allocation16 + $0x1c] sm:$0xf]
    %v799 = vld [vmem:[#allocation16 + $0x20] sm:$0xf]
    %v800 = vld [vmem:[#allocation16 + $0x24] sm:$0xf]
    %v801 = vld [vmem:[#allocation16 + $0x28] sm:$0xf]
    %v802 = vld [vmem:[#allocation16 + $0x2c] sm:$0xf]
    %v803 = vld [vmem:[#allocation16 + $0x30] sm:$0xf]
    %v804 = vld [vmem:[#allocation16 + $0x34] sm:$0xf]
    %v805 = vld [vmem:[#allocation16 + $0x38] sm:$0xf]
    %v806 = vld [vmem:[#allocation16 + $0x3c] sm:$0xf]
    %v807 = vld [vmem:[#allocation16 + $0x40] sm:$0xf]
    %v808 = vld [vmem:[#allocation16 + $0x44] sm:$0xf]
    %v809 = vld [vmem:[#allocation16 + $0x48] sm:$0xf]
    %v810 = vld [vmem:[#allocation16 + $0x4c] sm:$0xf]
    %v811 = vld [vmem:[#allocation16 + $0x50] sm:$0xf]
    %v812 = vld [vmem:[#allocation16 + $0x54] sm:$0xf]
    %v813 = vld [vmem:[#allocation16 + $0x58] sm:$0xf]
    %v814 = vld [vmem:[#allocation16 + $0x5c] sm:$0xf]
    %v815 = vld [vmem:[#allocation16 + $0x60] sm:$0xf]
    %v816 = vld [vmem:[#allocation16 + $0x64] sm:$0xf]
    %v817 = vld [vmem:[#allocation16 + $0x68] sm:$0xf]
    %v818 = vld [vmem:[#allocation16 + $0x6c] sm:$0xf]
    %v819 = vld [vmem:[#allocation16 + $0x70] sm:$0xf]
    %v820 = vld [vmem:[#allocation16 + $0x74] sm:$0xf]
    %v821 = vld [vmem:[#allocation16 + $0x78] sm:$0xf]
    %v822 = vld [vmem:[#allocation16 + $0x7c] sm:$0xf]
    %v823 = vld [vmem:[#allocation17] sm:$0x1]
    %v825 = vlaneseq
    %v826 = vshrl.u32 %v825, 7
    %v827 = vsub.s32 0, %v826
    %v828 = vrot.slane %v823, %v827
    %v862 = vunpack.c.l.b16 %v791
    %v863 = vunpack.c.l.b16 %v792
    %v864 = vunpack.c.l.b16 %v793
    %v865 = vunpack.c.l.b16 %v794
    %v866 = vunpack.c.l.b16 %v795
    %v867 = vunpack.c.l.b16 %v796
    %v868 = vunpack.c.l.b16 %v797
    %v869 = vunpack.c.l.b16 %v798
    %v870 = vunpack.c.l.b16 %v799
    %v871 = vunpack.c.l.b16 %v800
    %v872 = vunpack.c.l.b16 %v801
    %v873 = vunpack.c.l.b16 %v802
    %v874 = vunpack.c.l.b16 %v803
    %v875 = vunpack.c.l.b16 %v804
    %v876 = vunpack.c.l.b16 %v805
    %v877 = vunpack.c.l.b16 %v806
    %v878 = vunpack.c.l.b16 %v807
    %v879 = vunpack.c.l.b16 %v808
    %v880 = vunpack.c.l.b16 %v809
    %v881 = vunpack.c.l.b16 %v810
    %v882 = vunpack.c.l.b16 %v811
    %v883 = vunpack.c.l.b16 %v812
    %v884 = vunpack.c.l.b16 %v813
    %v885 = vunpack.c.l.b16 %v814
    %v886 = vunpack.c.l.b16 %v815
    %v887 = vunpack.c.l.b16 %v816
    %v888 = vunpack.c.l.b16 %v817
    %v889 = vunpack.c.l.b16 %v818
    %v890 = vunpack.c.l.b16 %v819
    %v891 = vunpack.c.l.b16 %v820
    %v892 = vunpack.c.l.b16 %v821
    %v893 = vunpack.c.l.b16 %v822
    %v894 = vpack.c.b16 %v863, %v862
    %v895 = vpack.c.b16 %v865, %v864
    %v896 = vpack.c.b16 %v867, %v866
    %v897 = vpack.c.b16 %v869, %v868
    %v898 = vpack.c.b16 %v871, %v870
    %v899 = vpack.c.b16 %v873, %v872
    %v900 = vpack.c.b16 %v875, %v874
    %v901 = vpack.c.b16 %v877, %v876
    %v902 = vpack.c.b16 %v879, %v878
    %v903 = vpack.c.b16 %v881, %v880
    %v904 = vpack.c.b16 %v883, %v882
    %v905 = vpack.c.b16 %v885, %v884
    %v906 = vpack.c.b16 %v887, %v886
    %v907 = vpack.c.b16 %v889, %v888
    %v908 = vpack.c.b16 %v891, %v890
    %v909 = vpack.c.b16 %v893, %v892
    %926 = vmatprep.subr.bf16.mxu0 0
    %927 = vmatpush1.bf16.msra.mxu0 %v894
    %928 = vmatprep.subr.bf16.mxu0 0
    %929 = vmatpush1.bf16.msra.mxu0 %v895
    %930 = vmatprep.subr.bf16.mxu0 0
    %931 = vmatpush1.bf16.msra.mxu0 %v896
    %932 = vmatprep.subr.bf16.mxu0 0
    %933 = vmatpush1.bf16.msra.mxu0 %v897
    %934 = vmatprep.subr.bf16.mxu0 0
    %935 = vmatpush1.bf16.msra.mxu0 %v898
    %936 = vmatprep.subr.bf16.mxu0 0
    %937 = vmatpush1.bf16.msra.mxu0 %v899
    %938 = vmatprep.subr.bf16.mxu0 0
    %939 = vmatpush1.bf16.msra.mxu0 %v900
    %940 = vmatprep.subr.bf16.mxu0 0
    %941 = vmatpush1.bf16.msra.mxu0 %v901
    %942 = vmatprep.subr.bf16.mxu0 0
    %943 = vmatpush1.bf16.msra.mxu0 %v902
    %944 = vmatprep.subr.bf16.mxu0 0
    %945 = vmatpush1.bf16.msra.mxu0 %v903
    %946 = vmatprep.subr.bf16.mxu0 0
    %947 = vmatpush1.bf16.msra.mxu0 %v904
    %948 = vmatprep.subr.bf16.mxu0 0
    %949 = vmatpush1.bf16.msra.mxu0 %v905
    %950 = vmatprep.subr.bf16.mxu0 0
    %951 = vmatpush1.bf16.msra.mxu0 %v906
    %952 = vmatprep.subr.bf16.mxu0 0
    %953 = vmatpush1.bf16.msra.mxu0 %v907
    %954 = vmatprep.subr.bf16.mxu0 0
    %955 = vmatpush1.bf16.msra.mxu0 %v908
    %956 = vmatprep.subr.bf16.mxu0 0
    %957 = vmatpush1.bf16.msra.mxu0 %v909
    %958 = vmatprep.mubr.bf16.mxu0 %v790
    %959 = vmatmul.mubr.bf16.gmra.mrb[0].mxu0 %v789
    %v960 = vpop.f32.mrb[0].mxu0
    %v961 = vadd.f32 %v828, %v960
    %v962 = vpop.f32.mrb[0].mxu0
    %v963 = vpop.f32.mrb[0].mxu0
    %v964 = vpop.f32.mrb[0].mxu0
    %965 = vdwg.mxu0
    %v966 = vxor.u32 %v961, 2147483648
    %v967 = vmul.f32 %v966, 1.442695
    %v968 = vpow.pop %v967
    %v969 = vadd.f32 %v968, 1.0
    %v970 = vrcp.pop %v969
    %v971 = vmul.f32 1.0, %v970
    %972 = vst [vmem:[#allocation19] sm:$0xff] %v971
    // Predicated region
    $region102: #{generator_forward.1} parent=1 // pred_check
      _
    $region103: #{generator_forward.1} parent=1 // pred_check_branch
      %974 = sbr.rel (0) target = $region105
    $region104: #{generator_forward.1} parent=1 // pred_region
      %s976 = ssub.s32 128, 128
      %977 = vsyncadd [#allocation4], %s976
      %s979 = sshll.u32 [#allocation19], 4
      %s980 = int_to_ptr.vmem [resolvable:$true] %s979
      %982 = dma.vmem_to_hbm [thread:$0]  %s980, 128, %s15, [#allocation4]
    $region105: #{generator_forward.1} parent=1 // pred_fallthru
      _
    // Predicated region
    $region106: #{generator_forward.1} parent=1 // pred_check
      _
    $region107: #{generator_forward.1} parent=1 // pred_check_branch
      %984 = sbr.rel (0) target = $region109
    $region108: #{generator_forward.1} parent=1 // pred_region
      %985 = dma.done [#allocation4], 128
    $region109: #{generator_forward.1} parent=1 // pred_fallthru
      _
    %986 = vsyncpa [#allocation3], 1
    %987 = vsyncpa [#allocation6], 1
    %988 = vsyncpa [#allocation9], 1
    %989 = vsyncpa [#allocation12], 1
    %990 = vsyncpa [#allocation15], 1
    %991 = vsyncpa [#allocation18], 1
    %992 = vsyncpa [#allocation4], 1

</llo_original>
